<compile_context>
chip_gen: v6e
topology: v6e:2x2x1
jax: 0.10.0
libtpu: 0.0.40
codegen_flags: <defaults>
</compile_context>

<pallas_src>
import math
from functools import lru_cache

import jax
import jax.numpy as jnp
from jax.experimental import pallas as pl
from jax.experimental.pallas import tpu as pltpu


# --------------------------------------------------------------------------- #
# Kernels
# --------------------------------------------------------------------------- #

def _make_fixed_kernel(k):
    """score = exp(-decay * delta);  weighted = memory * score."""
    if k == 1:
        def kernel(decay_ref, delta_ref, mem_ref, out_ref, score_ref):
            score = jnp.exp(-decay_ref[0, 0] * delta_ref[...])            # [TB,1]
            out_ref[...] = mem_ref[...] * score.astype(out_ref.dtype)
            score_ref[...] = score
    else:
        def kernel(decay_ref, delta_ref, mem_ref, expand_ref, out_ref, score_ref):
            score = jnp.exp(-decay_ref[0, 0] * delta_ref[...])            # [TB,k]
            # Expand each of the k per-row scores across its D lanes so the
            # weighted multiply/store is lane-dense (expand is a 0/1 matrix).
            dense = jnp.dot(score, expand_ref[...],
                            preferred_element_type=jnp.float32)           # [TB,k*D]
            out_ref[...] = mem_ref[...] * dense.astype(out_ref.dtype)
            score_ref[...] = score
    return kernel


def _make_adaptive_kernel(k):
    """rate = sigmoid(relu(delta*ww1 + b1) . w2 + b2); score = exp(-rate*delta)."""
    if k == 1:
        def kernel(delta_ref, mem_ref, ww1_ref, b1_ref, w2_ref, b2_ref,
                   out_ref, score_ref):
            delta = delta_ref[...]                                         # [TB,1]
            h = jnp.maximum(delta * ww1_ref[...] + b1_ref[...], 0.0)       # [TB,H]
            rate = jax.nn.sigmoid(
                jnp.sum(h * w2_ref[...], axis=-1, keepdims=True)
                + b2_ref[...])                                             # [TB,1]
            score = jnp.exp(-rate * delta)                                 # [TB,1]
            out_ref[...] = mem_ref[...] * score.astype(out_ref.dtype)
            score_ref[...] = score
    else:
        def kernel(delta_ref, mem_ref, ww1_ref, b1_ref, w2_ref, b2_ref,
                   expand_ref, out_ref, score_ref):
            delta = delta_ref[...]                                         # [TB,k]
            ww1 = ww1_ref[...]
            b1 = b1_ref[...]
            w2 = w2_ref[...]
            b2 = b2_ref[...]
            expand = expand_ref[...]                                       # [k,k*D]
            dense = None
            # Static unroll over the k folded sub-rows; all ops stay 2-D and on
            # the VPU/EUP (no MXU, no 3-D relayouts).
            for i in range(k):
                d_i = delta[:, i:i + 1]                                    # [TB,1]
                h_i = jnp.maximum(d_i * ww1 + b1, 0.0)                     # [TB,H]
                r_i = jax.nn.sigmoid(
                    jnp.sum(h_i * w2, axis=-1, keepdims=True) + b2)        # [TB,1]
                s_i = jnp.exp(-r_i * d_i)                                  # [TB,1]
                term = s_i * expand[i:i + 1, :]                            # [TB,k*D]
                dense = term if dense is None else dense + term
                score_ref[:, i:i + 1] = s_i
            out_ref[...] = mem_ref[...] * dense.astype(out_ref.dtype)
    return kernel


# --------------------------------------------------------------------------- #
# Tiling helpers
# --------------------------------------------------------------------------- #

_VMEM_LIMIT = 32 * 1024 * 1024  # explicit scoped-VMEM limit (safe on v5e/v6e/v7x)


def _round_up(x, m):
    return -(-x // m) * m


def _fold_factor(b, d):
    """Rows folded per lane-row so the memory block is 128-lane dense."""
    if d < 128 and 128 % d == 0:
        k = 128 // d
        if b % k == 0:
            return k
    return 1


def _pick_tile(rows, bytes_per_row):
    """Batch tile: ~8 MiB of double-buffered in+out blocks (fits default scoped
    VMEM on every generation incl. v7x's 64 MiB physical), capped at 1024 rows,
    and split into >= 2 grid steps when possible (v7x megacore sharding)."""
    budget = 8 << 20
    tb = budget // max(2 * bytes_per_row, 1)
    tb = max(8, min(1024, (tb // 8) * 8))
    tb = min(tb, _round_up(rows, 8))
    if rows > 8 and pl.cdiv(rows, tb) < 2:
        tb = max(8, _round_up(pl.cdiv(rows, 2), 8))
    return tb


def _expand_matrix(k, d):
    # expand[i, i*d:(i+1)*d] = 1  ->  score [TB,k] . expand = lane-dense score.
    return jnp.repeat(jnp.eye(k, dtype=jnp.float32), d, axis=1)


# --------------------------------------------------------------------------- #
# Cached end-to-end (jitted) forwards
# --------------------------------------------------------------------------- #

@lru_cache(maxsize=None)
def _fixed_forward(b, d, mem_dtype_name):
    out_dtype = jnp.dtype(mem_dtype_name)
    k = _fold_factor(b, d)
    rows, df = b // k, k * d
    bytes_per_row = 2 * df * out_dtype.itemsize + 8 * k
    tb = _pick_tile(rows, bytes_per_row)
    blk = lambda i: (i, 0)
    cst = lambda i: (0, 0)

    in_specs = [
        pl.BlockSpec(memory_space=pltpu.MemorySpace.SMEM),   # decay (1,1)
        pl.BlockSpec((tb, k), blk),                          # delta
        pl.BlockSpec((tb, df), blk),                         # memory
    ]
    if k > 1:
        in_specs.append(pl.BlockSpec((k, df), cst))          # expand (resident)

    call = pl.pallas_call(
        _make_fixed_kernel(k),
        out_shape=(jax.ShapeDtypeStruct((rows, df), out_dtype),
                   jax.ShapeDtypeStruct((rows, k), jnp.float32)),
        grid=(pl.cdiv(rows, tb),),                           # tail block masked
        in_specs=in_specs,
        out_specs=(pl.BlockSpec((tb, df), blk),
                   pl.BlockSpec((tb, k), blk)),
        compiler_params=pltpu.CompilerParams(
            dimension_semantics=("parallel",),
            vmem_limit_bytes=_VMEM_LIMIT),
    )

    def fwd(memory, message_time, current_time, decay):
        # delta in the callers' time dtype (enable jax x64 for 64-bit
        # timestamps), then f32 for the decay math.
        delta = jnp.maximum(current_time.reshape(b) - message_time.reshape(b), 0)
        delta = delta.astype(jnp.float32)
        args = [decay, delta.reshape(rows, k), memory.reshape(rows, df)]
        if k > 1:
            args.append(_expand_matrix(k, d))
        weighted, score = call(*args)
        return weighted.reshape(b, d), score.reshape(b)

    return jax.jit(fwd)


@lru_cache(maxsize=None)
def _adaptive_forward(b, d, mem_dtype_name, time_dim, hidden):
    out_dtype = jnp.dtype(mem_dtype_name)
    k = _fold_factor(b, d)
    rows, df = b // k, k * d
    bytes_per_row = 2 * df * out_dtype.itemsize + 8 * k
    tb = _pick_tile(rows, bytes_per_row)
    blk = lambda i: (i, 0)
    cst = lambda i: (0, 0)

    in_specs = [
        pl.BlockSpec((tb, k), blk),            # delta
        pl.BlockSpec((tb, df), blk),           # memory
        pl.BlockSpec((1, hidden), cst),        # ww1 = w @ W1   (resident)
        pl.BlockSpec((1, hidden), cst),        # b1             (resident)
        pl.BlockSpec((1, hidden), cst),        # w2 row         (resident)
        pl.BlockSpec((1, 1), cst),             # b2             (resident)
    ]
    if k > 1:
        in_specs.append(pl.BlockSpec((k, df), cst))   # expand (resident)

    call = pl.pallas_call(
        _make_adaptive_kernel(k),
        out_shape=(jax.ShapeDtypeStruct((rows, df), out_dtype),
                   jax.ShapeDtypeStruct((rows, k), jnp.float32)),
        grid=(pl.cdiv(rows, tb),),                            # tail block masked
        in_specs=in_specs,
        out_specs=(pl.BlockSpec((tb, df), blk),
                   pl.BlockSpec((tb, k), blk)),
        compiler_params=pltpu.CompilerParams(
            dimension_semantics=("parallel",),
            vmem_limit_bytes=_VMEM_LIMIT),
    )

    def fwd(memory, message_time, current_time, w, w1, b1, w2, b2):
        delta = jnp.maximum(current_time.reshape(b) - message_time.reshape(b), 0)
        delta = delta.astype(jnp.float32)
        # (w * delta) @ W1 == delta * (w @ W1): rank-1 rewrite, tiny XLA matmul.
        ww1 = jnp.dot(w, w1)                                   # [1, H]
        args = [delta.reshape(rows, k), memory.reshape(rows, df),
                ww1, b1, w2, b2]
        if k > 1:
            args.append(_expand_matrix(k, d))
        weighted, score = call(*args)
        return weighted.reshape(b, d), score.reshape(b)

    return jax.jit(fwd)


# --------------------------------------------------------------------------- #
# Module wrapper
# --------------------------------------------------------------------------- #

class DecayTemporalAttention:
    """JAX/Pallas port of the PyTorch DecayTemporalAttention module."""

    def __init__(self, time_dim, method='sum', decay_factor=0.1,
                 adaptive_decay=False, key=None):
        self.time_dim = time_dim
        self.method = method              # both methods: memory * score
        self.decay_factor = float(decay_factor)
        self.adaptive_decay = adaptive_decay
        self.hidden = time_dim // 2

        # nn.Parameter(torch.ones(time_dim)) stored as a [1, T] row.
        self.w = jnp.ones((1, time_dim), dtype=jnp.float32)
        self._decay = jnp.full((1, 1), self.decay_factor, jnp.float32)

        if adaptive_decay:
            if key is None:
                key = jax.random.PRNGKey(0)
            k1, k2, k3, k4 = jax.random.split(key, 4)
            bnd1 = 1.0 / math.sqrt(time_dim)
            bnd2 = 1.0 / math.sqrt(self.hidden)
            # Linear(T, H) stored [T, H]; Linear(H, 1) stored as a [1, H] row.
            self.w1 = jax.random.uniform(k1, (time_dim, self.hidden), jnp.float32,
                                         minval=-bnd1, maxval=bnd1)
            self.b1 = jax.random.uniform(k2, (1, self.hidden), jnp.float32,
                                         minval=-bnd1, maxval=bnd1)
            self.w2 = jax.random.uniform(k3, (1, self.hidden), jnp.float32,
                                         minval=-bnd2, maxval=bnd2)
            self.b2 = jax.random.uniform(k4, (1, 1), jnp.float32,
                                         minval=-bnd2, maxval=bnd2)

    def __call__(self, memory, message_time, current_time):
        B, D = memory.shape
        if self.adaptive_decay:
            fwd = _adaptive_forward(B, D, jnp.dtype(memory.dtype).name,
                                    self.time_dim, self.hidden)
            return fwd(memory, message_time, current_time,
                       self.w, self.w1, self.b1, self.w2, self.b2)
        fwd = _fixed_forward(B, D, jnp.dtype(memory.dtype).name)
        return fwd(memory, message_time, current_time, self._decay)


# --------------------------------------------------------------------------- #
# Pure-JAX reference & self-test
# --------------------------------------------------------------------------- #

def _reference(module, memory, message_time, current_time):
    delta = jnp.maximum(current_time - message_time, 0).astype(jnp.float32)
    if module.adaptive_decay:
        tf = module.w * delta[:, None]                               # [B,T]
        hid = jnp.maximum(tf @ module.w1 + module.b1, 0.0)           # [B,H]
        rate = jax.nn.sigmoid(jnp.sum(hid * module.w2, axis=-1) + module.b2[0, 0])
        score = jnp.exp(-rate * delta)
    else:
        score = jnp.exp(-module.decay_factor * delta)
    return memory * score[:, None], score


if __name__ == "__main__":
    key = jax.random.PRNGKey(0)
    ok = True

    # (B=8, D=32): lane-folded path (k=4, 128-lane-dense blocks).
    # (B=10, D=48): un-folded path + masked tail block (B not a tile multiple).
    for (batch, mem_dim, time_dim) in ((8, 32, 32), (10, 48, 32)):
        k_mem, k_mt, k_ct, k_par, key = jax.random.split(key, 5)
        memory = jax.random.normal(k_mem, (batch, mem_dim), jnp.float32)
        message_time = jax.random.uniform(k_mt, (batch,), jnp.float32,
                                          minval=0.0, maxval=10.0)
        current_time = message_time + jax.random.uniform(
            k_ct, (batch,), jnp.float32, minval=-1.0, maxval=5.0)

        for adaptive in (False, True):
            mod = DecayTemporalAttention(time_dim, method='sum', decay_factor=0.1,
                                         adaptive_decay=adaptive, key=k_par)
            weighted, score = mod(memory, message_time, current_time)
            weighted = jax.block_until_ready(weighted)
            score = jax.block_until_ready(score)

            ref_w, ref_s = _reference(mod, memory, message_time, current_time)
            ok &= bool(jnp.allclose(weighted, ref_w, atol=1e-5, rtol=1e-5))
            ok &= bool(jnp.allclose(score, ref_s, atol=1e-5, rtol=1e-5))

    print("KERNEL_OK" if ok else "KERNEL_MISMATCH")
</pallas_src>

<mosaic_0001>
module attributes {stable_mosaic.version = 11 : i64} {
  func.func @kernel(%arg0: i32, %arg1: memref<1x1xf32, #tpu.memory_space<smem>>, %arg2: memref<8x4xf32, #tpu.memory_space<vmem>>, %arg3: memref<8x128xf32, #tpu.memory_space<vmem>>, %arg4: memref<4x128xf32, #tpu.memory_space<vmem>>, %arg5: memref<8x128xf32, #tpu.memory_space<vmem>>, %arg6: memref<8x4xf32, #tpu.memory_space<vmem>>) attributes {dimension_semantics = [#tpu.dimension_semantics<parallel>], iteration_bounds = array<i64: 1>, scalar_prefetch = 0 : i64, scratch_operands = 0 : i64, tpu.core_type = #tpu.core_type<tc>, window_params = [{transform_indices = @transform_0, window_bounds = array<i64: 1, 1>}, {transform_indices = @transform_1, window_bounds = array<i64: 8, 4>}, {transform_indices = @transform_2, window_bounds = array<i64: 8, 128>}, {pipeline_mode = #tpu.pipeline_mode<synchronous>, transform_indices = @transform_3, window_bounds = array<i64: 4, 128>}, {transform_indices = @transform_4, window_bounds = array<i64: 8, 128>}, {transform_indices = @transform_5, window_bounds = array<i64: 8, 4>}]} {
    %c0 = arith.constant 0 : index
    %c0_0 = arith.constant 0 : index
    %0 = memref.load %arg1[%c0, %c0_0] : memref<1x1xf32, #tpu.memory_space<smem>>
    %cst = arith.constant 0.000000e+00 : f32
    %1 = arith.subf %cst, %0 : f32
    %c0_1 = arith.constant 0 : index
    %c0_2 = arith.constant 0 : index
    %2 = vector.load %arg2[%c0_1, %c0_2] : memref<8x4xf32, #tpu.memory_space<vmem>>, vector<8x4xf32>
    %3 = vector.broadcast %1 : f32 to vector<8x4xf32>
    %4 = arith.mulf %3, %2 : vector<8x4xf32>
    %5 = math.exp %4 : vector<8x4xf32>
    %c0_3 = arith.constant 0 : index
    %c0_4 = arith.constant 0 : index
    %6 = vector.load %arg4[%c0_3, %c0_4] : memref<4x128xf32, #tpu.memory_space<vmem>>, vector<4x128xf32>
    %cst_5 = arith.constant dense<0.000000e+00> : vector<8x128xf32>
    %7 = tpu.matmul %5, %6, %cst_5 {dimension_numbers = #tpu.dot_dimension_numbers<[1], [0], [0], [1], [0, 0, 1, 1], [], []>} : vector<8x4xf32>, vector<4x128xf32>, vector<8x128xf32> -> vector<8x128xf32>
    %c0_6 = arith.constant 0 : index
    %c0_7 = arith.constant 0 : index
    %8 = vector.load %arg3[%c0_6, %c0_7] : memref<8x128xf32, #tpu.memory_space<vmem>>, vector<8x128xf32>
    %9 = arith.mulf %8, %7 : vector<8x128xf32>
    %c0_8 = arith.constant 0 : index
    %c0_9 = arith.constant 0 : index
    %10 = vector.load %arg5[%c0_8, %c0_9] : memref<8x128xf32, #tpu.memory_space<vmem>>, vector<8x128xf32>
    tpu.vector_store %arg5[%c0_8, %c0_9], %9 {strides = array<i32>} : memref<8x128xf32, #tpu.memory_space<vmem>>, vector<8x128xf32>,
    %c0_10 = arith.constant 0 : index
    %c0_11 = arith.constant 0 : index
    %11 = vector.load %arg6[%c0_10, %c0_11] : memref<8x4xf32, #tpu.memory_space<vmem>>, vector<8x4xf32>
    tpu.vector_store %arg6[%c0_10, %c0_11], %5 {strides = array<i32>} : memref<8x4xf32, #tpu.memory_space<vmem>>, vector<8x4xf32>,
    return
  }
  func.func @transform_0(%arg0: i32) -> (i32, i32) {
    %c0_i32 = arith.constant 0 : i32
    %c0_i32_0 = arith.constant 0 : i32
    %c0_i32_1 = arith.constant 0 : i32
    return %c0_i32, %c0_i32_0 : i32, i32
  }
  func.func @transform_1(%arg0: i32) -> (i32, i32) {
    %c0_i32 = arith.constant 0 : i32
    %c0_i32_0 = arith.constant 0 : i32
    return %arg0, %c0_i32 : i32, i32
  }
  func.func @transform_2(%arg0: i32) -> (i32, i32) {
    %c0_i32 = arith.constant 0 : i32
    %c0_i32_0 = arith.constant 0 : i32
    return %arg0, %c0_i32 : i32, i32
  }
  func.func @transform_3(%arg0: i32) -> (i32, i32) {
    %c0_i32 = arith.constant 0 : i32
    %c0_i32_0 = arith.constant 0 : i32
    %c0_i32_1 = arith.constant 0 : i32
    return %c0_i32, %c0_i32_0 : i32, i32
  }
  func.func @transform_4(%arg0: i32) -> (i32, i32) {
    %c0_i32 = arith.constant 0 : i32
    %c0_i32_0 = arith.constant 0 : i32
    return %arg0, %c0_i32 : i32, i32
  }
  func.func @transform_5(%arg0: i32) -> (i32, i32) {
    %c0_i32 = arith.constant 0 : i32
    %c0_i32_0 = arith.constant 0 : i32
    return %arg0, %c0_i32 : i32, i32
  }
}

</mosaic_0001>

<llo_original>
// kernel: fwd.1
$region0: #{fwd.1}
  #allocation0 [shape = 'u32[]', space=smem, size = 0x4, offset = 0x4, fixed_abs, tag = 'smem constant byte address 0x4 - core index']
  #allocation1 [shape = 'u32[144,128]{1,0:T(1,128)}', space=vmem, size = 0x12000, scoped, tag = 'internal scratch']
  #allocation2 [shape = 'f32[1,1]{1,0:T(1,128)S(6)}', space=smem, size = 0x200, scoped, tag = 'scoped memory for fwd.1']
  %s0 = inlined_call_operand.<no memory space> [shape: f32[1,1], index: 0, kind: input, shape index: {}]
  %s1 = inlined_call_operand.vmem [shape: f32[2,4], index: 1, kind: input, shape index: {}]
  %s2 = inlined_call_operand.vmem [shape: f32[2,128], index: 2, kind: input, shape index: {}]
  %s3 = inlined_call_operand.vmem [shape: f32[4,128], index: 3, kind: input, shape index: {}]
  %s4 = inlined_call_operand.vmem [shape: f32[2,128], index: 4, kind: output, shape index: {0}]
  %s5 = inlined_call_operand.vmem [shape: f32[2,4], index: 5, kind: output, shape index: {1}]
  %6 = xla_tuple %s4, %s5
  %s7 = sld [smem:[#allocation0]]
  $region94: #{fwd.1} parent=0
    _
  %s9 = ssub.s32 1, %s7
  %s10 = scalar_select 0, %s9, %s7
  %11 = sst [smem:[#allocation2]] %s0
  $region1: #{fwd.1} parent=0
    #allocation3 [shape = 'u8[4096]{0}', space=vmem, size = 0x1000, scoped, tag = 'output window, operand 0, single buffered']
    #allocation4 [shape = 'u8[4096]{0}', space=vmem, size = 0x1000, scoped, tag = 'output window, operand 1, single buffered']
    // Predicated region
    $region2: #{fwd.1} parent=1 // pred_check
      _
    $region3: #{fwd.1} parent=1 // pred_check_branch
      %13 = sbr.rel (0) target = $region5
    $region4: #{fwd.1} parent=1 // pred_region
      _
    $region5: #{fwd.1} parent=1 // pred_fallthru
      _
    // Predicated region
    $region6: #{fwd.1} parent=1 // pred_check
      _
    $region7: #{fwd.1} parent=1 // pred_check_branch
      %15 = sbr.rel (0) target = $region9
    $region8: #{fwd.1} parent=1 // pred_region
      _
    $region9: #{fwd.1} parent=1 // pred_fallthru
      _
    // Predicated region
    $region10: #{fwd.1} parent=1 // pred_check
      _
    $region11: #{fwd.1} parent=1 // pred_check_branch
      %17 = sbr.rel (0) target = $region13
    $region12: #{fwd.1} parent=1 // pred_region
      _
    $region13: #{fwd.1} parent=1 // pred_fallthru
      _
    // Predicated region
    $region14: #{fwd.1} parent=1 // pred_check
      _
    $region15: #{fwd.1} parent=1 // pred_check_branch
      %19 = sbr.rel (0) target = $region17
    $region16: #{fwd.1} parent=1 // pred_region
      _
    $region17: #{fwd.1} parent=1 // pred_fallthru
      _
    %s20 = sld [smem:[#allocation2]]
    %s21 = ssub.f32 0.0, %s20
    %v22 = vld [vmem:[%s1] sm:$0xff]
    %v23 = vstv %s21
    %v24 = vmul.f32 %v23, %v22
    %v25 = vmul.f32 %v24, 1.442695
    %v26 = vpow.pop %v25
    %v27 = vld [vmem:[%s3] sm:$0xf]
    %vm28 = vcmask 31744
    %v30 = vsel %vm28, %v26, 0
    %vm32 = vcmask 1043456
    %v34 = vsel %vm32, %v27, 0
    %36 = vmatprep.subr.mxu0 0.0
    %37 = vmatpush1.msra.mxu0 0.0
    %38 = vmatprep.subr.mxu0 0.0
    %39 = vmatpush1.msra.mxu0 0.0
    %40 = vmatprep.subr.mxu0 0.0
    %41 = vmatpush1.msra.mxu0 0.0
    %42 = vmatprep.subr.mxu0 0.0
    %43 = vmatpush1.msra.mxu0 0.0
    %44 = vmatprep.subr.mxu0 0.0
    %45 = vmatpush1.msra.mxu0 0.0
    %46 = vmatprep.subr.mxu0 0.0
    %47 = vmatpush1.msra.mxu0 0.0
    %48 = vmatprep.subr.mxu0 0.0
    %49 = vmatpush1.msra.mxu0 0.0
    %50 = vmatprep.subr.mxu0 0.0
    %51 = vmatpush1.msra.mxu0 0.0
    %52 = vmatprep.subr.mxu0 0.0
    %53 = vmatpush1.msra.mxu0 0.0
    %54 = vmatprep.subr.mxu0 0.0
    %55 = vmatpush1.msra.mxu0 0.0
    %56 = vmatprep.subr.mxu0 0.0
    %57 = vmatpush1.msra.mxu0 0.0
    %58 = vmatprep.subr.mxu0 0.0
    %59 = vmatpush1.msra.mxu0 0.0
    %60 = vmatprep.subr.mxu0 0.0
    %61 = vmatpush1.msra.mxu0 0.0
    %62 = vmatprep.subr.mxu0 0.0
    %63 = vmatpush1.msra.mxu0 0.0
    %64 = vmatprep.subr.mxu0 0.0
    %65 = vmatpush1.msra.mxu0 0.0
    %66 = vmatprep.subr.mxu0 0.0
    %67 = vmatpush1.msra.mxu0 %v34
    %68 = vmatprep.subr.mxu0 0.0
    %69 = vmatpush2.msra.mxu0 0.0
    %70 = vmatprep.subr.mxu0 0.0
    %71 = vmatpush2.msra.mxu0 0.0
    %72 = vmatprep.subr.mxu0 0.0
    %73 = vmatpush2.msra.mxu0 0.0
    %74 = vmatprep.subr.mxu0 0.0
    %75 = vmatpush2.msra.mxu0 0.0
    %76 = vmatprep.subr.mxu0 0.0
    %77 = vmatpush2.msra.mxu0 0.0
    %78 = vmatprep.subr.mxu0 0.0
    %79 = vmatpush2.msra.mxu0 0.0
    %80 = vmatprep.subr.mxu0 0.0
    %81 = vmatpush2.msra.mxu0 0.0
    %82 = vmatprep.subr.mxu0 0.0
    %83 = vmatpush2.msra.mxu0 0.0
    %84 = vmatprep.subr.mxu0 0.0
    %85 = vmatpush2.msra.mxu0 0.0
    %86 = vmatprep.subr.mxu0 0.0
    %87 = vmatpush2.msra.mxu0 0.0
    %88 = vmatprep.subr.mxu0 0.0
    %89 = vmatpush2.msra.mxu0 0.0
    %90 = vmatprep.subr.mxu0 0.0
    %91 = vmatpush2.msra.mxu0 0.0
    %92 = vmatprep.subr.mxu0 0.0
    %93 = vmatpush2.msra.mxu0 0.0
    %94 = vmatprep.subr.mxu0 0.0
    %95 = vmatpush2.msra.mxu0 0.0
    %96 = vmatprep.subr.mxu0 0.0
    %97 = vmatpush2.msra.mxu0 0.0
    %98 = vmatprep.subr.mxu0 0.0
    %99 = vmatpush2.msra.mxu0 0.0
    %100 = vmatprep.mubr.f32.mxu0 0.0
    %101 = vmatmul.mubr.f32.gmra.mxu0 %v30
    %v102 = vpop.f32.mrf.mxu0
    %v103 = vadd.f32 0.0, %v102
    %v104 = vpop.f32.mrf.mxu0
    %105 = vdwg.mxu0
    %v106 = vld [vmem:[%s2] sm:$0xff]
    %v107 = vmul.f32 %v106, %v103
    %108 = vst [vmem:[#allocation3] sm:$0xff] %v107
    %109 = vst.msk [vmem:[#allocation4] sm:$0xff] %vm28, %v26
    // Predicated region
    $region18: #{fwd.1} parent=1 // pred_check
      _
    $region19: #{fwd.1} parent=1 // pred_check_branch
      %111 = sbr.rel (0) target = $region21
    $region20: #{fwd.1} parent=1 // pred_region
      // Predicated region
      $region22: #{fwd.1} parent=20 // pred_check
        _
      $region23: #{fwd.1} parent=20 // pred_check_branch
        %113 = sbr.rel (0) target = $region25
      $region24: #{fwd.1} parent=20 // pred_region
        // Predicated region
        $region26: #{fwd.1} parent=24 // pred_check
          _
        $region27: #{fwd.1} parent=24 // pred_check_branch
          %115 = sbr.rel target = $region29
        $region28: #{fwd.1} parent=24 // pred_region
          // Predicated region
          $region41: #{fwd.1} parent=28 // pred_check
            _
          $region42: #{fwd.1} parent=28 // pred_check_branch
            %131 = sbr.rel (0) target = $region44
          $region43: #{fwd.1} parent=28 // pred_region
            %s133 = ssub.s32 4, 1
            loop: start=0, step=1, limit=1
            $region45: #{fwd.1} parent=43 // loop_pre_header
              _
            $region46: #{fwd.1} parent=43 // loop_header
              %s135 = sphi 0, %s139
              %p136 = scmp.ge.s32.totalorder %s135, 1
              %s140 = sphi [#allocation3], [#allocation3]
              %s141 = sphi %s4, %s4
            $region47: #{fwd.1} parent=43 // loop_header_branch
              %138 = sbr.rel (%p136) target = $region51
            $region48: #{fwd.1} parent=43 // loop_body
              %v142 = vld [vmem:[%s140] sm:%s133]
              %143 = vst [vmem:[%s141] sm:%s133] %v142
            $region49: #{fwd.1} parent=43 // loop_footer
              %s139 = sadd.s32 1, %s135
            $region50: #{fwd.1} parent=43 // loop_footer_branch
              %134 = sbr.rel target = $region46
            $region51: #{fwd.1} parent=43 // loop_exit
              _
          $region44: #{fwd.1} parent=28 // pred_fallthru
            _
        $region29: #{fwd.1} parent=24 // pred_fallthru
          _
        // Predicated region
        $region30: #{fwd.1} parent=24 // pred_check
          _
        $region31: #{fwd.1} parent=24 // pred_check_branch
          %117 = sbr.rel (0) target = $region33
        $region32: #{fwd.1} parent=24 // pred_region
          %s119 = ssub.s32 4, 1
          loop: start=0, step=1, limit=1
          $region34: #{fwd.1} parent=32 // loop_pre_header
            _
          $region35: #{fwd.1} parent=32 // loop_header
            %s121 = sphi 0, %s125
            %p122 = scmp.ge.s32.totalorder %s121, 1
            %s126 = sphi [#allocation3], [#allocation3]
            %s127 = sphi %s4, %s4
          $region36: #{fwd.1} parent=32 // loop_header_branch
            %124 = sbr.rel (%p122) target = $region40
          $region37: #{fwd.1} parent=32 // loop_body
            %v128 = vld [vmem:[%s126] sm:%s119]
            %129 = vst [vmem:[%s127] sm:%s119] %v128
          $region38: #{fwd.1} parent=32 // loop_footer
            %s125 = sadd.s32 1, %s121
          $region39: #{fwd.1} parent=32 // loop_footer_branch
            %120 = sbr.rel target = $region35
          $region40: #{fwd.1} parent=32 // loop_exit
            _
        $region33: #{fwd.1} parent=24 // pred_fallthru
          _
      $region25: #{fwd.1} parent=20 // pred_fallthru
        _
      %144 = vnop
    $region21: #{fwd.1} parent=1 // pred_fallthru
      _
    // Predicated region
    $region52: #{fwd.1} parent=1 // pred_check
      _
    $region53: #{fwd.1} parent=1 // pred_check_branch
      %146 = sbr.rel (0) target = $region55
    $region54: #{fwd.1} parent=1 // pred_region
      // Predicated region
      $region56: #{fwd.1} parent=54 // pred_check
        _
      $region57: #{fwd.1} parent=54 // pred_check_branch
        %148 = sbr.rel (0) target = $region59
      $region58: #{fwd.1} parent=54 // pred_region
        // Predicated region
        $region60: #{fwd.1} parent=58 // pred_check
          _
        $region61: #{fwd.1} parent=58 // pred_check_branch
          %150 = sbr.rel target = $region63
        $region62: #{fwd.1} parent=58 // pred_region
          // Predicated region
          $region75: #{fwd.1} parent=62 // pred_check
            _
          $region76: #{fwd.1} parent=62 // pred_check_branch
            %166 = sbr.rel (0) target = $region78
          $region77: #{fwd.1} parent=62 // pred_region
            %s168 = ssub.s32 4, 1
            loop: start=0, step=1, limit=1
            $region79: #{fwd.1} parent=77 // loop_pre_header
              _
            $region80: #{fwd.1} parent=77 // loop_header
              %s170 = sphi 0, %s174
              %p171 = scmp.ge.s32.totalorder %s170, 1
              %s175 = sphi [#allocation4], [#allocation4]
              %s176 = sphi %s5, %s5
            $region81: #{fwd.1} parent=77 // loop_header_branch
              %173 = sbr.rel (%p171) target = $region85
            $region82: #{fwd.1} parent=77 // loop_body
              %v177 = vld [vmem:[%s175] sm:%s168]
              %178 = vst [vmem:[%s176] sm:%s168] %v177
            $region83: #{fwd.1} parent=77 // loop_footer
              %s174 = sadd.s32 1, %s170
            $region84: #{fwd.1} parent=77 // loop_footer_branch
              %169 = sbr.rel target = $region80
            $region85: #{fwd.1} parent=77 // loop_exit
              _
          $region78: #{fwd.1} parent=62 // pred_fallthru
            _
        $region63: #{fwd.1} parent=58 // pred_fallthru
          _
        // Predicated region
        $region64: #{fwd.1} parent=58 // pred_check
          _
        $region65: #{fwd.1} parent=58 // pred_check_branch
          %152 = sbr.rel (0) target = $region67
        $region66: #{fwd.1} parent=58 // pred_region
          %s154 = ssub.s32 4, 1
          loop: start=0, step=1, limit=1
          $region68: #{fwd.1} parent=66 // loop_pre_header
            _
          $region69: #{fwd.1} parent=66 // loop_header
            %s156 = sphi 0, %s160
            %p157 = scmp.ge.s32.totalorder %s156, 1
            %s161 = sphi [#allocation4], [#allocation4]
            %s162 = sphi %s5, %s5
          $region70: #{fwd.1} parent=66 // loop_header_branch
            %159 = sbr.rel (%p157) target = $region74
          $region71: #{fwd.1} parent=66 // loop_body
            %v163 = vld [vmem:[%s161] sm:%s154]
            %164 = vst [vmem:[%s162] sm:%s154] %v163
          $region72: #{fwd.1} parent=66 // loop_footer
            %s160 = sadd.s32 1, %s156
          $region73: #{fwd.1} parent=66 // loop_footer_branch
            %155 = sbr.rel target = $region69
          $region74: #{fwd.1} parent=66 // loop_exit
            _
        $region67: #{fwd.1} parent=58 // pred_fallthru
          _
      $region59: #{fwd.1} parent=54 // pred_fallthru
        _
      %179 = vnop
    $region55: #{fwd.1} parent=1 // pred_fallthru
      _
    // Predicated region
    $region86: #{fwd.1} parent=1 // pred_check
      _
    $region87: #{fwd.1} parent=1 // pred_check_branch
      %181 = sbr.rel (0) target = $region89
    $region88: #{fwd.1} parent=1 // pred_region
      _
    $region89: #{fwd.1} parent=1 // pred_fallthru
      _
    // Predicated region
    $region90: #{fwd.1} parent=1 // pred_check
      _
    $region91: #{fwd.1} parent=1 // pred_check_branch
      %183 = sbr.rel (0) target = $region93
    $region92: #{fwd.1} parent=1 // pred_region
      _
    $region93: #{fwd.1} parent=1 // pred_fallthru
      _

</llo_original>
